<compile_context>
chip_gen: v6e
topology: v6e:2x2x1
jax: 0.10.0
libtpu: 0.0.40
codegen_flags: <defaults>
</compile_context>

<pallas_src>
import math

import jax
import jax.numpy as jnp
from jax.experimental import pallas as pl
from jax.experimental.pallas import tpu as pltpu


def _gcn_rows_kernel(x_ref, adjd_ref, wdiag_ref, bias_ref, o_ref):
    # x_ref:     (TM, H) rows of x (flattened over batch*seq)
    # adjd_ref:  (TM, 1) diag(adj) per row
    # wdiag_ref: (1, H)  diag(W)
    # bias_ref:  (1, H)
    # o_ref:     (TM, H)
    out = x_ref[...] * wdiag_ref[...] * adjd_ref[...] + bias_ref[...]
    o_ref[...] = jnp.maximum(out, 0.0).astype(o_ref.dtype)


def _pick_block_rows(rows, H, itemsize):
    """Largest row tile (multiple of 8, <=1024) s.t. double-buffered x + out
    tiles stay within a conservative VMEM budget; never larger than the
    (8-aligned) number of rows."""
    budget = 8 << 20                       # bytes for 2 tensors x 2 buffers
    per_row = 4 * H * itemsize
    tm = min(1024, max(8, budget // per_row))
    tm = max(8, (tm // 8) * 8)             # (8,128) rule: multiple of 8
    rows8 = pl.cdiv(rows, 8) * 8
    return int(min(tm, rows8))


def gcn_forward(x, adj, weight, bias):
    """x: (B, L, H), adj: (B, L, L), weight: (H, H), bias: (H,)."""
    B, L, H = x.shape
    rows = B * L

    # Wrapper-side diagonal extraction: kernel streams only what it uses.
    w_diag = jnp.diagonal(weight).reshape(1, H).astype(x.dtype)            # (1, H)
    adj_diag = jnp.diagonal(adj, axis1=1, axis2=2).reshape(rows, 1)        # (B*L, 1)
    adj_diag = adj_diag.astype(x.dtype)
    bias2 = bias.reshape(1, H).astype(x.dtype)

    x2 = x.reshape(rows, H)

    tm = _pick_block_rows(rows, H, x.dtype.itemsize)
    padded = pl.cdiv(rows, tm) * tm
    if padded != rows:
        x2 = jnp.pad(x2, ((0, padded - rows), (0, 0)))
        adj_diag = jnp.pad(adj_diag, ((0, padded - rows), (0, 0)))

    out = pl.pallas_call(
        _gcn_rows_kernel,
        out_shape=jax.ShapeDtypeStruct((padded, H), x.dtype),
        grid_spec=pltpu.PrefetchScalarGridSpec(
            num_scalar_prefetch=0,
            grid=(padded // tm,),
            in_specs=[
                pl.BlockSpec((tm, H), lambda i: (i, 0)),   # x rows
                pl.BlockSpec((tm, 1), lambda i: (i, 0)),   # diag(adj) rows
                pl.BlockSpec((1, H), lambda i: (0, 0)),    # diag(W)
                pl.BlockSpec((1, H), lambda i: (0, 0)),    # bias
            ],
            out_specs=pl.BlockSpec((tm, H), lambda i: (i, 0)),
        ),
        compiler_params=pltpu.CompilerParams(
            dimension_semantics=("parallel",),
            vmem_limit_bytes=32 << 20,
        ),
    )(x2, adj_diag, w_diag, bias2)

    return out[:rows].reshape(B, L, H)


class SememeEmbeddingPallas:
    """Mirror of SememeEmbedding(config, hidden_size, use_sememe)."""

    def __init__(self, hidden_size, use_sememe=True, key=jax.random.PRNGKey(42)):
        self.hidden_size = hidden_size
        self.use_sememe = use_sememe
        # GraphConvolution(hidden_size, hidden_size) init: uniform(-stdv, stdv)
        stdv = 1.0 / math.sqrt(hidden_size)
        kw, kb = jax.random.split(key)
        self.weight = jax.random.uniform(
            kw, (hidden_size, hidden_size), jnp.float32, minval=-stdv, maxval=stdv)
        self.bias = jax.random.uniform(
            kb, (hidden_size,), jnp.float32, minval=-stdv, maxval=stdv)

    def __call__(self, sent_embedding, sememes, adjs):
        # sent_embedding is unused by the original (forward is `pass`);
        # we run the contained GCN on (sememes, adjs).
        del sent_embedding
        return gcn_forward(sememes, adjs, self.weight, self.bias)


def _reference(x, adj, weight, bias):
    support = jnp.einsum('blh,hh->blh', x, weight)
    output = jnp.einsum('bll,blh->blh', adj, support)
    return jax.nn.relu(output + bias)


if __name__ == "__main__":
    B, L, H = 2, 8, 32  # batch, seq (num sememes), hidden
    key = jax.random.PRNGKey(0)
    k1, k2, k3 = jax.random.split(key, 3)

    sent_embedding = jax.random.normal(k1, (B, H), jnp.float32)
    sememes = jax.random.normal(k2, (B, L, H), jnp.float32)
    adjs = jax.random.normal(k3, (B, L, L), jnp.float32)

    module = SememeEmbeddingPallas(hidden_size=H, use_sememe=True)
    out = module(sent_embedding, sememes, adjs)
    out = jax.block_until_ready(out)

    ref = _reference(sememes, adjs, module.weight, module.bias)
    assert out.shape == (B, L, H)
    assert jnp.allclose(out, ref, atol=1e-5, rtol=1e-5), "mismatch vs reference"

    print("KERNEL_OK")
</pallas_src>

<mosaic_0001>
module attributes {stable_mosaic.version = 11 : i64} {
  func.func @_gcn_rows_kernel(%arg0: i32, %arg1: memref<16x32xf32, #tpu.memory_space<vmem>>, %arg2: memref<16x1xf32, #tpu.memory_space<vmem>>, %arg3: memref<1x32xf32, #tpu.memory_space<vmem>>, %arg4: memref<1x32xf32, #tpu.memory_space<vmem>>, %arg5: memref<16x32xf32, #tpu.memory_space<vmem>>) attributes {dimension_semantics = [#tpu.dimension_semantics<parallel>], iteration_bounds = array<i64: 1>, scalar_prefetch = 0 : i64, scratch_operands = 0 : i64, tpu.core_type = #tpu.core_type<tc>, window_params = [{transform_indices = @transform_0, window_bounds = array<i64: 16, 32>}, {transform_indices = @transform_1, window_bounds = array<i64: 16, 1>}, {pipeline_mode = #tpu.pipeline_mode<synchronous>, transform_indices = @transform_2, window_bounds = array<i64: 1, 32>}, {pipeline_mode = #tpu.pipeline_mode<synchronous>, transform_indices = @transform_3, window_bounds = array<i64: 1, 32>}, {transform_indices = @transform_4, window_bounds = array<i64: 16, 32>}]} {
    %c0 = arith.constant 0 : index
    %c0_0 = arith.constant 0 : index
    %0 = vector.load %arg1[%c0, %c0_0] : memref<16x32xf32, #tpu.memory_space<vmem>>, vector<16x32xf32>
    %c0_1 = arith.constant 0 : index
    %c0_2 = arith.constant 0 : index
    %1 = vector.load %arg3[%c0_1, %c0_2] : memref<1x32xf32, #tpu.memory_space<vmem>>, vector<1x32xf32>
    %2 = vector.broadcast %1 : vector<1x32xf32> to vector<16x32xf32>
    %3 = arith.mulf %0, %2 : vector<16x32xf32>
    %c0_3 = arith.constant 0 : index
    %c0_4 = arith.constant 0 : index
    %4 = vector.load %arg2[%c0_3, %c0_4] : memref<16x1xf32, #tpu.memory_space<vmem>>, vector<16x1xf32>
    %5 = vector.broadcast %4 : vector<16x1xf32> to vector<16x32xf32>
    %6 = arith.mulf %3, %5 : vector<16x32xf32>
    %c0_5 = arith.constant 0 : index
    %c0_6 = arith.constant 0 : index
    %7 = vector.load %arg4[%c0_5, %c0_6] : memref<1x32xf32, #tpu.memory_space<vmem>>, vector<1x32xf32>
    %8 = vector.broadcast %7 : vector<1x32xf32> to vector<16x32xf32>
    %9 = arith.addf %6, %8 : vector<16x32xf32>
    %cst = arith.constant 0.000000e+00 : f32
    %10 = vector.broadcast %cst : f32 to vector<16x32xf32>
    %11 = arith.maximumf %9, %10 : vector<16x32xf32>
    %c0_7 = arith.constant 0 : index
    %c0_8 = arith.constant 0 : index
    %12 = vector.load %arg5[%c0_7, %c0_8] : memref<16x32xf32, #tpu.memory_space<vmem>>, vector<16x32xf32>
    tpu.vector_store %arg5[%c0_7, %c0_8], %11 {strides = array<i32>} : memref<16x32xf32, #tpu.memory_space<vmem>>, vector<16x32xf32>,
    return
  }
  func.func @transform_0(%arg0: i32) -> (i32, i32) {
    %c0_i32 = arith.constant 0 : i32
    %c0_i32_0 = arith.constant 0 : i32
    return %arg0, %c0_i32 : i32, i32
  }
  func.func @transform_1(%arg0: i32) -> (i32, i32) {
    %c0_i32 = arith.constant 0 : i32
    %c0_i32_0 = arith.constant 0 : i32
    return %arg0, %c0_i32 : i32, i32
  }
  func.func @transform_2(%arg0: i32) -> (i32, i32) {
    %c0_i32 = arith.constant 0 : i32
    %c0_i32_0 = arith.constant 0 : i32
    %c0_i32_1 = arith.constant 0 : i32
    return %c0_i32, %c0_i32_0 : i32, i32
  }
  func.func @transform_3(%arg0: i32) -> (i32, i32) {
    %c0_i32 = arith.constant 0 : i32
    %c0_i32_0 = arith.constant 0 : i32
    %c0_i32_1 = arith.constant 0 : i32
    return %c0_i32, %c0_i32_0 : i32, i32
  }
  func.func @transform_4(%arg0: i32) -> (i32, i32) {
    %c0_i32 = arith.constant 0 : i32
    %c0_i32_0 = arith.constant 0 : i32
    return %arg0, %c0_i32 : i32, i32
  }
}

</mosaic_0001>

<llo_original>
// kernel: tpu_custom_call.1
$region0: #{tpu_custom_call.1}
  #allocation0 [shape = 'u32[]', space=smem, size = 0x4, offset = 0x4, fixed_abs, tag = 'smem constant byte address 0x4 - core index']
  #allocation1 [shape = 'u32[144,128]{1,0:T(1,128)}', space=vmem, size = 0x12000, scoped, tag = 'internal scratch']
  %s0 = inlined_call_operand.vmem [shape: f32[16,32], index: 0, kind: input, shape index: {}]
  %s1 = inlined_call_operand.vmem [shape: f32[16,1], index: 1, kind: input, shape index: {}]
  %s2 = inlined_call_operand.vmem [shape: f32[1,32], index: 2, kind: input, shape index: {}]
  %s3 = inlined_call_operand.vmem [shape: f32[1,32], index: 3, kind: input, shape index: {}]
  %s4 = inlined_call_operand.hbm [shape: f32[16,32], index: 4, kind: output, shape index: {}]
  %s5 = sld [smem:[#allocation0]]
  $region26: #{tpu_custom_call.1} parent=0
    _
  %s7 = ssub.s32 1, %s5
  %s8 = scalar_select 0, %s7, %s5
  $region1: #{tpu_custom_call.1} parent=0
    #allocation2 [shape = 'u8[8192]{0}', space=vmem, size = 0x2000, scoped, tag = 'output window, operand 0, single buffered']
    #allocation3 [shape = 's32[1]{0}', space=sflag, size = 0x4, scoped, tag = 'scoped memory for tpu_custom_call.1']
    %9 = vsyncpa [#allocation3], 0
    // Predicated region
    $region2: #{tpu_custom_call.1} parent=1 // pred_check
      _
    $region3: #{tpu_custom_call.1} parent=1 // pred_check_branch
      %11 = sbr.rel (0) target = $region5
    $region4: #{tpu_custom_call.1} parent=1 // pred_region
      _
    $region5: #{tpu_custom_call.1} parent=1 // pred_fallthru
      _
    // Predicated region
    $region6: #{tpu_custom_call.1} parent=1 // pred_check
      _
    $region7: #{tpu_custom_call.1} parent=1 // pred_check_branch
      %13 = sbr.rel (0) target = $region9
    $region8: #{tpu_custom_call.1} parent=1 // pred_region
      _
    $region9: #{tpu_custom_call.1} parent=1 // pred_fallthru
      _
    // Predicated region
    $region10: #{tpu_custom_call.1} parent=1 // pred_check
      _
    $region11: #{tpu_custom_call.1} parent=1 // pred_check_branch
      %15 = sbr.rel (0) target = $region13
    $region12: #{tpu_custom_call.1} parent=1 // pred_region
      _
    $region13: #{tpu_custom_call.1} parent=1 // pred_fallthru
      _
    // Predicated region
    $region14: #{tpu_custom_call.1} parent=1 // pred_check
      _
    $region15: #{tpu_custom_call.1} parent=1 // pred_check_branch
      %17 = sbr.rel (0) target = $region17
    $region16: #{tpu_custom_call.1} parent=1 // pred_region
      _
    $region17: #{tpu_custom_call.1} parent=1 // pred_fallthru
      _
    %v18 = vld [vmem:[%s0] sm:$0xff]
    %v19 = vld [vmem:[%s0 + $0x8] sm:$0xff]
    %v20 = vld [vmem:[%s2] sm:$0x1]
    %v22 = vlaneseq
    %v23 = vshrl.u32 %v22, 7
    %v24 = vsub.s32 0, %v23
    %v25 = vrot.slane %v20, %v24
    %v27 = vmul.f32 %v18, %v25
    %v28 = vmul.f32 %v19, %v25
    %v29 = vld [vmem:[%s1] sm:$0xff]
    %v30 = vld [vmem:[%s1 + $0x8] sm:$0xff]
    %32 = vset.pattern.permute.xlu0 0
    %33 = vperm.xlu0 %32, %v29
    %v34 = vpop.permute.xlu0 %33
    %37 = vset.pattern.permute.xlu0 0
    %38 = vperm.xlu0 %37, %v30
    %v39 = vpop.permute.xlu0 %38
    %v41 = vmul.f32 %v27, %v34
    %v42 = vmul.f32 %v28, %v39
    %v43 = vld [vmem:[%s3] sm:$0x1]
    %v45 = vlaneseq
    %v46 = vshrl.u32 %v45, 7
    %v47 = vsub.s32 0, %v46
    %v48 = vrot.slane %v43, %v47
    %v50 = vadd.f32 %v41, %v48
    %v51 = vadd.f32 %v42, %v48
    %v52 = vmax.f32 %v50, 0.0
    %v53 = vmax.f32 %v51, 0.0
    %vm54 = vcmask 261120
    %55 = vst.msk [vmem:[#allocation2] sm:$0xff] %vm54, %v52
    %56 = vst.msk [vmem:[#allocation2 + $0x8] sm:$0xff] %vm54, %v53
    // Predicated region
    $region18: #{tpu_custom_call.1} parent=1 // pred_check
      _
    $region19: #{tpu_custom_call.1} parent=1 // pred_check_branch
      %58 = sbr.rel (0) target = $region21
    $region20: #{tpu_custom_call.1} parent=1 // pred_region
      %s60 = ssub.s32 256, 256
      %61 = vsyncadd [#allocation3], %s60
      %s62 = sshll.u32 [#allocation2], 4
      %s63 = int_to_ptr.vmem [resolvable:$true] %s62
      %68 = dma.vmem_to_hbm [thread:$0]  %s63, 256, %s4, [#allocation3], 128, 128, 8
    $region21: #{tpu_custom_call.1} parent=1 // pred_fallthru
      _
    // Predicated region
    $region22: #{tpu_custom_call.1} parent=1 // pred_check
      _
    $region23: #{tpu_custom_call.1} parent=1 // pred_check_branch
      %70 = sbr.rel (0) target = $region25
    $region24: #{tpu_custom_call.1} parent=1 // pred_region
      %71 = dma.done [#allocation3], 256
    $region25: #{tpu_custom_call.1} parent=1 // pred_fallthru
      _
    %72 = vsyncpa [#allocation3], 1

</llo_original>
